<compile_context>
chip_gen: v7x
topology: tpu7x:2x2x1
jax: 0.10.0
libtpu: 0.0.40
codegen_flags: <defaults>
</compile_context>

<pallas_src>
import jax
import jax.numpy as jnp
from jax.experimental import pallas as pl
from jax.experimental.pallas import tpu as pltpu


def _final_score_kernel(w_ref, b_ref, x_ref, o_ref):
    # w_ref: (p, 1)  f32 theta5 weight column, VMEM, resident across grid steps
    # b_ref: (1,)    f32 theta5 bias, SMEM scalar
    # x_ref: (p, tn) streaming tile of mu[0] (any float dtype)
    # o_ref: (1, tn) output tile (f32)
    x = x_ref[...].astype(jnp.float32)
    # VPU broadcast-multiply + sublane reduction; MXU stays idle.
    acc = jnp.sum(w_ref[...] * x, axis=0, keepdims=True)
    o_ref[...] = (acc + b_ref[0]).astype(o_ref.dtype)


def _choose_tile_n(p, n, itemsize):
    """Pick the lane-tile width tn for the (p, tn) streamed blocks."""
    # Target ~4 MiB per input tile (double-buffered -> ~8 MiB VMEM), rounded
    # to 128 lanes.  Big enough to hit >=85% of HBM roofline on all chips.
    tn = (4 * 1024 * 1024) // max(p * itemsize, 1)
    tn = max(128, (tn // 128) * 128)
    # Keep >= 8 grid steps when n allows (pipelining + per-core sharding).
    if n >= 8 * 128:
        tn = min(tn, max(128, ((n // 8) // 128) * 128))
    if tn >= n:
        tn = n  # single block covering the full axis (block == full dim)
    return tn


def _dimension_semantics():
    """Use CORE_PARALLEL on multi-TensorCore chips (v7x), else 'parallel'."""
    try:
        kind = jax.devices()[0].device_kind.lower()
        if "v7" in kind:
            return (pltpu.CORE_PARALLEL,)
    except Exception:
        pass
    return ("parallel",)


def compute_final_score(mu0, weight, bias, *, tn=None, force_pallas=False):
    """mu0: (p, n); weight: (1, p); bias: (1,).  Returns (n,) float32."""
    p, n = mu0.shape
    itemsize = jnp.dtype(mu0.dtype).itemsize

    # Keep the resident weight in f32 (it never streams from HBM per step, so
    # casting it to bf16 only loses precision vs. the PyTorch f32 Linear).
    w_col = weight.reshape(p, 1).astype(jnp.float32)
    b = bias.reshape(1).astype(jnp.float32)

    # Fast path: for tiny inputs the fixed pallas_call launch overhead dwarfs
    # the HBM traffic; plain XLA (fusible with mu0's producer) is faster.
    if not force_pallas and p * n * itemsize < 256 * 1024:
        return jnp.sum(w_col * mu0.astype(jnp.float32), axis=0) + b[0]

    if tn is None:
        tn = _choose_tile_n(p, n, itemsize)
    tn = min(tn, n)
    grid = pl.cdiv(n, tn)

    cost = pl.CostEstimate(
        flops=2 * p * n,
        transcendentals=0,
        bytes_accessed=p * n * itemsize + 4 * n + 4 * p + 4,
    )

    out = pl.pallas_call(
        _final_score_kernel,
        out_shape=jax.ShapeDtypeStruct((1, n), jnp.float32),
        grid_spec=pltpu.PrefetchScalarGridSpec(
            num_scalar_prefetch=0,
            grid=(grid,),
            in_specs=[
                pl.BlockSpec((p, 1), lambda j: (0, 0)),              # weight column (resident)
                pl.BlockSpec(memory_space=pltpu.MemorySpace.SMEM),   # bias scalar
                pl.BlockSpec((p, tn), lambda j: (0, j)),             # mu[0] tile
            ],
            out_specs=pl.BlockSpec((1, tn), lambda j: (0, j)),
        ),
        compiler_params=pltpu.CompilerParams(
            dimension_semantics=_dimension_semantics(),
            # ~8 MiB double-buffered input + small resident/output; 32 MiB is
            # comfortably under v7x's 64 MiB physical VMEM per core and well
            # above v5e's 16 MiB scoped default.
            vmem_limit_bytes=32 * 1024 * 1024,
        ),
        cost_estimate=cost,
    )(w_col, b, mu0)
    return out[0]


if __name__ == "__main__":
    key = jax.random.PRNGKey(0)
    k_mu, k_w, k_b, k_mu2, k_mu3 = jax.random.split(key, 5)

    # Module-consistent small shapes: mu is a stack (L, p, n); forward uses mu[0].
    L, p, n = 3, 32, 200
    mu = jax.random.normal(k_mu, (L, p, n), dtype=jnp.float32)
    theta5_w = jax.random.normal(k_w, (1, p), dtype=jnp.float32) * 0.1
    theta5_b = jax.random.normal(k_b, (1,), dtype=jnp.float32) * 0.1

    # Case 1: small shape, forced through the Pallas path (single full block).
    out = jax.block_until_ready(
        compute_final_score(mu[0], theta5_w, theta5_b, force_pallas=True))
    ref = mu[0].T @ theta5_w[0] + theta5_b[0]
    assert out.shape == (n,)
    assert jnp.allclose(out, ref, atol=1e-5, rtol=1e-5)

    # Case 2: same small shape through the non-Pallas fast path.
    out_fast = jax.block_until_ready(compute_final_score(mu[0], theta5_w, theta5_b))
    assert jnp.allclose(out_fast, ref, atol=1e-5, rtol=1e-5)

    # Case 3: multi-step grid with a ragged last block, no host-side padding.
    n2 = 1100
    mu0_big = jax.random.normal(k_mu2, (p, n2), dtype=jnp.float32)
    out2 = jax.block_until_ready(
        compute_final_score(mu0_big, theta5_w, theta5_b, force_pallas=True))
    ref2 = mu0_big.T @ theta5_w[0] + theta5_b[0]
    assert out2.shape == (n2,)
    assert jnp.allclose(out2, ref2, atol=1e-5, rtol=1e-5)

    # Case 4: bf16 mu0 (halved HBM bytes), f32 resident weight + f32 accumulate.
    mu0_bf16 = jax.random.normal(k_mu3, (p, n2), dtype=jnp.float32).astype(jnp.bfloat16)
    out3 = jax.block_until_ready(
        compute_final_score(mu0_bf16, theta5_w, theta5_b, force_pallas=True))
    ref3 = mu0_bf16.astype(jnp.float32).T @ theta5_w[0] + theta5_b[0]
    assert out3.shape == (n2,)
    assert jnp.allclose(out3, ref3, atol=3e-2, rtol=3e-2)

    print("KERNEL_OK")
</pallas_src>

<mosaic_0001>
module attributes {stable_mosaic.version = 11 : i64} {
  func.func @_final_score_kernel(%arg0: i32, %arg1: memref<32x1xf32, #tpu.memory_space<vmem>>, %arg2: memref<1xf32, #tpu.memory_space<smem>>, %arg3: memref<32x200xf32, #tpu.memory_space<vmem>>, %arg4: memref<1x200xf32, #tpu.memory_space<vmem>>) attributes {dimension_semantics = [#tpu.dimension_semantics<parallel>], iteration_bounds = array<i64: 1>, scalar_prefetch = 0 : i64, scratch_operands = 0 : i64, tpu.core_type = #tpu.core_type<tc>, window_params = [{pipeline_mode = #tpu.pipeline_mode<synchronous>, transform_indices = @transform_0, window_bounds = array<i64: 32, 1>}, {transform_indices = @transform_1, window_bounds = array<i64: 1>}, {transform_indices = @transform_2, window_bounds = array<i64: 32, 200>}, {transform_indices = @transform_3, window_bounds = array<i64: 1, 200>}]} {
    %c0 = arith.constant 0 : index
    %c0_0 = arith.constant 0 : index
    %0 = vector.load %arg3[%c0, %c0_0] : memref<32x200xf32, #tpu.memory_space<vmem>>, vector<32x200xf32>
    %c0_1 = arith.constant 0 : index
    %c0_2 = arith.constant 0 : index
    %1 = vector.load %arg1[%c0_1, %c0_2] : memref<32x1xf32, #tpu.memory_space<vmem>>, vector<32x1xf32>
    %2 = vector.broadcast %1 : vector<32x1xf32> to vector<32x200xf32>
    %3 = arith.mulf %2, %0 : vector<32x200xf32>
    %cst = arith.constant dense<0.000000e+00> : vector<200xf32>
    %4 = vector.multi_reduction <add>, %3, %cst [0] : vector<32x200xf32> to vector<200xf32>
    %5 = vector.shape_cast %4 : vector<200xf32> to vector<1x200xf32>
    %c0_3 = arith.constant 0 : index
    %6 = memref.load %arg2[%c0_3] : memref<1xf32, #tpu.memory_space<smem>>
    %7 = vector.broadcast %6 : f32 to vector<1x200xf32>
    %8 = arith.addf %5, %7 : vector<1x200xf32>
    %c0_4 = arith.constant 0 : index
    %c0_5 = arith.constant 0 : index
    %9 = vector.load %arg4[%c0_4, %c0_5] : memref<1x200xf32, #tpu.memory_space<vmem>>, vector<1x200xf32>
    tpu.vector_store %arg4[%c0_4, %c0_5], %8 {strides = array<i32>} : memref<1x200xf32, #tpu.memory_space<vmem>>, vector<1x200xf32>,
    return
  }
  func.func @transform_0(%arg0: i32) -> (i32, i32) {
    %c0_i32 = arith.constant 0 : i32
    %c0_i32_0 = arith.constant 0 : i32
    %c0_i32_1 = arith.constant 0 : i32
    return %c0_i32, %c0_i32_0 : i32, i32
  }
  func.func @transform_1(%arg0: i32) -> i32 {
    %c0_i32 = arith.constant 0 : i32
    %c0_i32_0 = arith.constant 0 : i32
    return %c0_i32 : i32
  }
  func.func @transform_2(%arg0: i32) -> (i32, i32) {
    %c0_i32 = arith.constant 0 : i32
    %c0_i32_0 = arith.constant 0 : i32
    return %c0_i32, %arg0 : i32, i32
  }
  func.func @transform_3(%arg0: i32) -> (i32, i32) {
    %c0_i32 = arith.constant 0 : i32
    %c0_i32_0 = arith.constant 0 : i32
    return %c0_i32, %arg0 : i32, i32
  }
}

</mosaic_0001>

<llo_original>
// kernel: tpu_custom_call.1
$region0: #{tpu_custom_call.1}
  #allocation0 [shape = 'u32[]', space=smem, size = 0x4, offset = 0x4, fixed_abs, tag = 'smem constant byte address 0x4 - core index']
  #allocation1 [shape = 'u32[144,128]{1,0:T(1,128)}', space=vmem, size = 0x12000, scoped, tag = 'internal scratch']
  #allocation2 [shape = 'f32[1]{0:T(128)S(6)}', space=smem, size = 0x200, scoped, tag = 'scoped memory for tpu_custom_call.1']
  %s0 = inlined_call_operand.vmem [shape: f32[32,1], index: 0, kind: input, shape index: {}]
  %s1 = inlined_call_operand.<no memory space> [shape: f32[1], index: 1, kind: input, shape index: {}]
  %s2 = inlined_call_operand.hbm [shape: f32[32,200], index: 2, kind: input, shape index: {}]
  %s3 = inlined_call_operand.hbm [shape: f32[1,200], index: 3, kind: output, shape index: {}]
  %s4 = sld [smem:[#allocation0]]
  $region26: #{tpu_custom_call.1} parent=0
    _
  %s6 = ssub.s32 1, %s4
  %s7 = scalar_select 0, %s6, %s4
  %8 = sst [smem:[#allocation2]] %s1
  $region1: #{tpu_custom_call.1} parent=0
    #allocation3 [shape = 'u8[32768]{0}', space=vmem, size = 0x8000, scoped, tag = 'input window, operand 2, single buffered']
    #allocation4 [shape = 's32[1]{0}', space=sflag, size = 0x4, scoped, tag = 'scoped memory for tpu_custom_call.1']
    #allocation5 [shape = 's32[1]{0}', space=sflag, size = 0x4, scoped, tag = 'scoped memory for tpu_custom_call.1']
    #allocation6 [shape = 'u8[1024]{0}', space=vmem, size = 0x400, scoped, tag = 'output window, operand 0, single buffered']
    %9 = vsyncpa [#allocation4], 0
    %10 = vsyncpa [#allocation5], 0
    // Predicated region
    $region2: #{tpu_custom_call.1} parent=1 // pred_check
      _
    $region3: #{tpu_custom_call.1} parent=1 // pred_check_branch
      %12 = sbr.rel (0) target = $region5
    $region4: #{tpu_custom_call.1} parent=1 // pred_region
      _
    $region5: #{tpu_custom_call.1} parent=1 // pred_fallthru
      _
    // Predicated region
    $region6: #{tpu_custom_call.1} parent=1 // pred_check
      _
    $region7: #{tpu_custom_call.1} parent=1 // pred_check_branch
      %14 = sbr.rel (0) target = $region9
    $region8: #{tpu_custom_call.1} parent=1 // pred_region
      _
    $region9: #{tpu_custom_call.1} parent=1 // pred_fallthru
      _
    // Predicated region
    $region10: #{tpu_custom_call.1} parent=1 // pred_check
      _
    $region11: #{tpu_custom_call.1} parent=1 // pred_check_branch
      %16 = sbr.rel (0) target = $region13
    $region12: #{tpu_custom_call.1} parent=1 // pred_region
      %s18 = ssub.s32 1024, 1024
      %19 = vsyncadd [#allocation4], %s18
      %s20 = sshll.u32 [#allocation3], 4
      %s21 = int_to_ptr.vmem [resolvable:$true] %s20
      %26 = dma.hbm_to_vmem [thread:$0]  %s2, 1024, %s21, [#allocation4], 256, 256, 16
    $region13: #{tpu_custom_call.1} parent=1 // pred_fallthru
      _
    // Predicated region
    $region14: #{tpu_custom_call.1} parent=1 // pred_check
      _
    $region15: #{tpu_custom_call.1} parent=1 // pred_check_branch
      %28 = sbr.rel (0) target = $region17
    $region16: #{tpu_custom_call.1} parent=1 // pred_region
      %29 = dma.done [#allocation4], 1024
    $region17: #{tpu_custom_call.1} parent=1 // pred_fallthru
      _
    %v30 = vld [vmem:[#allocation3] sm:$0xff]
    %v31 = vld [vmem:[#allocation3 + $0x8] sm:$0xff]
    %v32 = vld [vmem:[#allocation3 + $0x10] sm:$0xff]
    %v33 = vld [vmem:[#allocation3 + $0x18] sm:$0xff]
    %v34 = vld [vmem:[#allocation3 + $0x20] sm:$0xff]
    %v35 = vld [vmem:[#allocation3 + $0x28] sm:$0xff]
    %v36 = vld [vmem:[#allocation3 + $0x30] sm:$0xff]
    %v37 = vld [vmem:[#allocation3 + $0x38] sm:$0xff]
    %v38 = vld [vmem:[%s0] sm:$0xff]
    %v39 = vld [vmem:[%s0 + $0x8] sm:$0xff]
    %v40 = vld [vmem:[%s0 + $0x10] sm:$0xff]
    %v41 = vld [vmem:[%s0 + $0x18] sm:$0xff]
    %43 = vset.pattern.permute.xlu0 0
    %44 = vperm.xlu0 %43, %v38
    %v45 = vpop.permute.xlu0 %44
    %48 = vset.pattern.permute.xlu0 0
    %49 = vperm.xlu0 %48, %v39
    %v50 = vpop.permute.xlu0 %49
    %53 = vset.pattern.permute.xlu0 0
    %54 = vperm.xlu0 %53, %v40
    %v55 = vpop.permute.xlu0 %54
    %58 = vset.pattern.permute.xlu0 0
    %59 = vperm.xlu0 %58, %v41
    %v60 = vpop.permute.xlu0 %59
    %v62 = vmul.f32 %v45, %v30
    %v63 = vmul.f32 %v45, %v31
    %v64 = vmul.f32 %v50, %v32
    %v65 = vmul.f32 %v50, %v33
    %v66 = vmul.f32 %v55, %v34
    %v67 = vmul.f32 %v55, %v35
    %v68 = vmul.f32 %v60, %v36
    %v69 = vmul.f32 %v60, %v37
    %v70 = vadd.f32 %v62, %v64
    %v71 = vadd.f32 %v70, %v66
    %v72 = vadd.f32 %v71, %v68
    %v73 = vrot.slane %v72, 4
    %v74 = vadd.f32 %v72, %v73
    %v75 = vrot.slane %v74, 2
    %v76 = vadd.f32 %v74, %v75
    %v77 = vrot.slane %v76, 1
    %v78 = vadd.f32 %v76, %v77
    %vm79 = vcmask 588800
    %v80 = vsel %vm79, %v63, 0.0
    %v81 = vsel %vm79, %v65, 0.0
    %v82 = vadd.f32 %v80, %v81
    %v83 = vsel %vm79, %v67, 0.0
    %v84 = vadd.f32 %v82, %v83
    %v85 = vsel %vm79, %v69, 0.0
    %v86 = vadd.f32 %v84, %v85
    %v87 = vrot.slane %v86, 4
    %v88 = vadd.f32 %v86, %v87
    %v89 = vrot.slane %v88, 2
    %v90 = vadd.f32 %v88, %v89
    %v91 = vrot.slane %v90, 1
    %v92 = vadd.f32 %v90, %v91
    %s93 = sld [smem:[#allocation2]]
    %v94 = vstv %s93
    %v95 = vadd.f32 %v78, %v94
    %v96 = vadd.f32 %v92, %v94
    %v99 = vcombine.low %v95, %v96
    %v101 = vunpack.c.l.s4 1966171168
    %v102 = vunpack.c.0.s8 %v101
    %v103 = vlaneseq
    %v104 = vshrl.u32 %v103, 7
    %v105 = vsub.s32 %v102, %v104
    %v106 = vrot.slane %v99, %v105
    %v108 = vunpack.c.l.s4 1966171168
    %v109 = vunpack.c.0.s8 %v108
    %v110 = vlaneseq
    %v111 = vshrl.u32 %v110, 7
    %v112 = vsub.s32 %v109, %v111
    %v113 = vrot.slane %v106, %v112
    %v115 = vlaneseq
    %vm116 = vcmp.ge.s32.totalorder %v115, 0
    %vm117 = vcmp.lt.s32.totalorder %v115, 200
    %vm118 = vmand %vm116, %vm117
    %119 = vst.msk [vmem:[#allocation6] sm:$0x3] %vm118, %v113
    // Predicated region
    $region18: #{tpu_custom_call.1} parent=1 // pred_check
      _
    $region19: #{tpu_custom_call.1} parent=1 // pred_check_branch
      %121 = sbr.rel (0) target = $region21
    $region20: #{tpu_custom_call.1} parent=1 // pred_region
      %s123 = ssub.s32 32, 32
      %124 = vsyncadd [#allocation5], %s123
      %s126 = sshll.u32 [#allocation6], 4
      %s127 = int_to_ptr.vmem [resolvable:$true] %s126
      %129 = dma.vmem_to_hbm [thread:$0]  %s127, 32, %s3, [#allocation5]
    $region21: #{tpu_custom_call.1} parent=1 // pred_fallthru
      _
    // Predicated region
    $region22: #{tpu_custom_call.1} parent=1 // pred_check
      _
    $region23: #{tpu_custom_call.1} parent=1 // pred_check_branch
      %131 = sbr.rel (0) target = $region25
    $region24: #{tpu_custom_call.1} parent=1 // pred_region
      %132 = dma.done [#allocation5], 32
    $region25: #{tpu_custom_call.1} parent=1 // pred_fallthru
      _
    %133 = vsyncpa [#allocation4], 1
    %134 = vsyncpa [#allocation5], 1

</llo_original>
